<compile_context>
chip_gen: v5e
topology: v5e:2x2
jax: 0.10.0
libtpu: 0.0.40
codegen_flags: <defaults>
</compile_context>

<pallas_src>
import jax
import jax.numpy as jnp
import numpy as np
from jax.experimental import pallas as pl
from jax.experimental.pallas import tpu as pltpu


# ---------------------------------------------------------------------------
# Tunables
# ---------------------------------------------------------------------------
_MINOR_TILE_CAP = 512               # per-dim element cap for the minor (lane) tiles
_BLOCK_BYTES = 2 * 1024 * 1024      # per-block VMEM budget; x2 (in+out) x2 (dbl buf) ~ 8 MiB
_VMEM_LIMIT_BYTES = 32 * 1024 * 1024


# ---------------------------------------------------------------------------
# Kernels
# ---------------------------------------------------------------------------
def _swap_minor_kernel(x_ref, o_ref):
    # XLU transpose of the last two dims of the tile (batched over any leading
    # block dims, which may be > 1 after leading-dim folding).
    o_ref[...] = jnp.swapaxes(x_ref[...], -2, -1)


def _copy_kernel(x_ref, o_ref):
    # Pure copy: the transpose is done entirely by the out_specs index_map
    # (block re-addressing / DMA), no in-kernel data movement.
    o_ref[...] = x_ref[...]


# ---------------------------------------------------------------------------
# Tiling helpers
# ---------------------------------------------------------------------------
def _sublane_align(dtype):
    """Sublane alignment: 8 for 4-byte, 16 for 2-byte, 32 for 1-byte dtypes."""
    return max(8, 32 // max(jnp.dtype(dtype).itemsize, 1))


def _largest_divisor_leq(n, cap):
    """Largest divisor of n that is <= cap (>= 1)."""
    n = int(n)
    cap = min(n, max(int(cap), 1))
    for c in range(cap, 0, -1):
        if n % c == 0:
            return c
    return 1


def _pick_tile(dim, align, cap):
    """Tile size for a block dim that must be a multiple of `align` or the full dim.

    Prefers exact aligned divisors of `dim`; if none exists below `cap`, returns
    an aligned (lane-dense) tile and the caller's pl.cdiv grid handles the
    masked edge block.  Small dims (<= cap) use the full dim (always legal).
    """
    dim, align, cap = int(dim), int(align), max(int(cap), 1)
    if dim <= cap:
        return dim
    if dim <= align or cap < align:
        return min(dim, align)
    t_max = (cap // align) * align
    for t in range(t_max, 0, -align):
        if dim % t == 0:
            return t
    return t_max  # aligned non-divisor -> cdiv grid + masked edge block


def _cost_estimate(x):
    nbytes = int(x.size) * jnp.dtype(x.dtype).itemsize
    return pl.CostEstimate(flops=0, transcendentals=0, bytes_accessed=2 * nbytes)


def _compiler_params(n_grid):
    return pltpu.CompilerParams(
        dimension_semantics=("parallel",) * n_grid,
        vmem_limit_bytes=_VMEM_LIMIT_BYTES)


# ---------------------------------------------------------------------------
# Transpose paths
# ---------------------------------------------------------------------------
def _transpose_minor(x):
    """Swap the last two dims with a tiled Pallas kernel (XLU tile transpose)."""
    *lead, m, n = x.shape
    nb = len(lead)
    itemsize = jnp.dtype(x.dtype).itemsize

    # tm appears as the lane dim of the output and tn as the lane dim of the
    # input, so both must be multiples of 128 or the full dim.
    tm = _pick_tile(m, 128, _MINOR_TILE_CAP)
    tn = _pick_tile(n, 128, _MINOR_TILE_CAP)

    # Batch leading dims while the per-block footprint stays under budget
    # (amortizes the ~0.35us/step grid overhead for small (m, n) slabs and
    # turns the writeback into one large contiguous DMA).
    tile_bytes = max(tm * tn * itemsize, 1)
    lead_block = [1] * nb
    mult_budget = max(_BLOCK_BYTES // tile_bytes, 1)
    for i in range(nb - 1, -1, -1):          # fold innermost leading dims first
        if mult_budget <= 1:
            break
        c = _largest_divisor_leq(lead[i], mult_budget)
        lead_block[i] = c
        mult_budget //= c

    grid = tuple(pl.cdiv(lead[i], lead_block[i]) for i in range(nb)) + (
        pl.cdiv(m, tm), pl.cdiv(n, tn))

    def in_map(*idx):
        return idx

    def out_map(*idx):
        return idx[:nb] + (idx[nb + 1], idx[nb])

    in_block = tuple(lead_block) + (tm, tn)
    out_block = tuple(lead_block) + (tn, tm)
    out_shape = tuple(lead) + (n, m)
    return pl.pallas_call(
        _swap_minor_kernel,
        out_shape=jax.ShapeDtypeStruct(out_shape, x.dtype),
        grid=grid,
        in_specs=[pl.BlockSpec(in_block, in_map)],
        out_specs=pl.BlockSpec(out_block, out_map),
        compiler_params=_compiler_params(len(grid)),
        cost_estimate=_cost_estimate(x),
    )(x)


def _transpose_major(x, d0, d1):
    """Swap two leading (non-minor) dims: pure BlockSpec re-addressing."""
    shape = x.shape
    nd = len(shape)
    itemsize = jnp.dtype(x.dtype).itemsize
    sub_align = _sublane_align(x.dtype)

    # Start with every non-swapped dim fully folded into the block; the two
    # swapped dims have block size 1 so the body stays a pure copy.
    block = [int(s) for s in shape]
    block[d0] = 1
    block[d1] = 1

    def blk_bytes(b):
        total = itemsize
        for v in b:
            total *= int(v)
        return total

    # If over budget, push outermost non-swapped leading dims into the grid
    # first (keeps the folded block contiguous in HBM)...
    for d in range(nd - 2):
        if blk_bytes(block) <= _BLOCK_BYTES:
            break
        if d in (d0, d1):
            continue
        block[d] = 1
    # ... then tile the sublane dim (dtype-aware alignment), then the lane dim.
    if blk_bytes(block) > _BLOCK_BYTES:
        per_row = blk_bytes(block) // block[nd - 2]
        block[nd - 2] = _pick_tile(shape[nd - 2], sub_align,
                                   max(_BLOCK_BYTES // max(per_row, 1), 1))
    if blk_bytes(block) > _BLOCK_BYTES:
        per_col = blk_bytes(block) // block[nd - 1]
        block[nd - 1] = _pick_tile(shape[nd - 1], 128,
                                   max(_BLOCK_BYTES // max(per_col, 1), 1))

    grid = tuple(pl.cdiv(shape[d], block[d]) for d in range(nd))

    def in_map(*idx):
        return idx

    def out_map(*idx):
        idx = list(idx)
        idx[d0], idx[d1] = idx[d1], idx[d0]
        return tuple(idx)

    out_shape = list(shape)
    out_shape[d0], out_shape[d1] = out_shape[d1], out_shape[d0]
    return pl.pallas_call(
        _copy_kernel,
        out_shape=jax.ShapeDtypeStruct(tuple(out_shape), x.dtype),
        grid=grid,
        in_specs=[pl.BlockSpec(tuple(block), in_map)],
        out_specs=pl.BlockSpec(tuple(block), out_map),
        compiler_params=_compiler_params(len(grid)),
        cost_estimate=_cost_estimate(x),
    )(x)


def transpose(x, dim0, dim1):
    """y = x.transpose(dim0, dim1).contiguous() (PyTorch semantics)."""
    nd = x.ndim
    d0, d1 = dim0 % nd, dim1 % nd
    if d0 == d1:
        return x  # swapping a dim with itself is the identity
    d0, d1 = min(d0, d1), max(d0, d1)
    if d0 == nd - 2 and d1 == nd - 1:
        return _transpose_minor(x)
    if d1 < nd - 2:
        return _transpose_major(x, d0, d1)
    # TODO(synk): mixed swaps (one leading dim with one of the last two dims)
    # are not lowered to a Pallas kernel here.
    raise NotImplementedError(
        "Transpose of a leading dim with a lane/sublane dim is not implemented.")


class Transpose:
    """Pallas analogue of the PyTorch nn.Module."""

    def __init__(self, dim0, dim1):
        self.dim0 = dim0
        self.dim1 = dim1

    def __call__(self, x):
        return transpose(x, self.dim0, self.dim1)


# ---------------------------------------------------------------------------
# Self-test
# ---------------------------------------------------------------------------
if __name__ == "__main__":
    key = jax.random.PRNGKey(0)
    k1, k2, k3, k4 = jax.random.split(key, 4)

    # 1) Canonical mamba usage: (B, L, D) -> (B, D, L) via transpose(1, 2).
    #    Batch dim is folded into the block -> a single large grid step.
    x1 = jax.random.normal(k1, (2, 8, 128), dtype=jnp.float32)
    y1 = jax.block_until_ready(Transpose(1, 2)(x1))
    np.testing.assert_array_equal(np.asarray(y1), np.swapaxes(np.asarray(x1), 1, 2))
    assert y1.shape == (2, 128, 8)

    # 2) Multi-tile, lane-dense minor transpose (512-wide tiles, batched lead dim).
    x2 = jax.random.normal(k2, (2, 1024, 256), dtype=jnp.float32)
    y2 = jax.block_until_ready(Transpose(-1, -2)(x2))
    np.testing.assert_array_equal(np.asarray(y2), np.swapaxes(np.asarray(x2), -1, -2))
    assert y2.shape == (2, 256, 1024)

    # 3) Unaligned dim larger than the tile cap: lane-dense 512 tiles + masked edge.
    x3 = jax.random.normal(k3, (1, 520, 256), dtype=jnp.float32)
    y3 = jax.block_until_ready(Transpose(1, 2)(x3))
    np.testing.assert_array_equal(np.asarray(y3), np.swapaxes(np.asarray(x3), 1, 2))
    assert y3.shape == (1, 256, 520)

    # 4) Major-dim swap: copy-only body, transpose done purely in the out index_map.
    x4 = jax.random.normal(k4, (2, 4, 8, 128), dtype=jnp.float32)
    y4 = jax.block_until_ready(Transpose(0, 1)(x4))
    np.testing.assert_array_equal(np.asarray(y4), np.swapaxes(np.asarray(x4), 0, 1))
    assert y4.shape == (4, 2, 8, 128)

    print("KERNEL_OK")
</pallas_src>

<mosaic_0001>
module attributes {stable_mosaic.version = 11 : i64} {
  func.func @_swap_minor_kernel(%arg0: i32, %arg1: i32, %arg2: i32, %arg3: memref<2x8x128xf32, #tpu.memory_space<vmem>>, %arg4: memref<2x128x8xf32, #tpu.memory_space<vmem>>) attributes {dimension_semantics = [#tpu.dimension_semantics<parallel>, #tpu.dimension_semantics<parallel>, #tpu.dimension_semantics<parallel>], iteration_bounds = array<i64: 1, 1, 1>, scalar_prefetch = 0 : i64, scratch_operands = 0 : i64, tpu.core_type = #tpu.core_type<tc>, window_params = [{transform_indices = @transform_0, window_bounds = array<i64: 2, 8, 128>}, {transform_indices = @transform_1, window_bounds = array<i64: 2, 128, 8>}]} {
    %c0 = arith.constant 0 : index
    %c0_0 = arith.constant 0 : index
    %c0_1 = arith.constant 0 : index
    %0 = vector.load %arg3[%c0, %c0_0, %c0_1] : memref<2x8x128xf32, #tpu.memory_space<vmem>>, vector<2x8x128xf32>
    %1 = tpu.transpose %0, [0, 2, 1] : vector<2x8x128xf32> -> vector<2x128x8xf32>
    %c0_2 = arith.constant 0 : index
    %c0_3 = arith.constant 0 : index
    %c0_4 = arith.constant 0 : index
    %2 = vector.load %arg4[%c0_2, %c0_3, %c0_4] : memref<2x128x8xf32, #tpu.memory_space<vmem>>, vector<2x128x8xf32>
    tpu.vector_store %arg4[%c0_2, %c0_3, %c0_4], %1 {strides = array<i32>} : memref<2x128x8xf32, #tpu.memory_space<vmem>>, vector<2x128x8xf32>,
    return
  }
  func.func @transform_0(%arg0: i32, %arg1: i32, %arg2: i32) -> (i32, i32, i32) {
    %c0_i32 = arith.constant 0 : i32
    return %arg0, %arg1, %arg2 : i32, i32, i32
  }
  func.func @transform_1(%arg0: i32, %arg1: i32, %arg2: i32) -> (i32, i32, i32) {
    %c0_i32 = arith.constant 0 : i32
    return %arg0, %arg2, %arg1 : i32, i32, i32
  }
}

</mosaic_0001>

<llo_original>
// kernel: tpu_custom_call.1
$region0: #{tpu_custom_call.1}
  #allocation0 [shape = 'u32[]', space=smem, size = 0x4, offset = 0x4, fixed_abs, tag = 'smem constant byte address 0x4 - core index']
  #allocation1 [shape = 'u32[72,128]{1,0:T(1,128)}', space=vmem, size = 0x9000, scoped, tag = 'internal scratch']
  %s0 = inlined_call_operand.hbm [shape: f32[2,8,128], index: 0, kind: input, shape index: {}]
  %s1 = inlined_call_operand.vmem [shape: f32[2,128,8], index: 1, kind: output, shape index: {}]
  %s2 = sld [smem:[#allocation0]]
  $region18: #{tpu_custom_call.1} parent=0
    _
  %s4 = ssub.s32 1, %s2
  %s5 = scalar_select 0, %s4, %s2
  $region1: #{tpu_custom_call.1} parent=0
    #allocation2 [shape = 'u8[8192]{0}', space=vmem, size = 0x2000, scoped, tag = 'input window, operand 0, single buffered']
    #allocation3 [shape = 's32[1]{0}', space=sflag, size = 0x4, scoped, tag = 'scoped memory for tpu_custom_call.1']
    %6 = vsyncpa [#allocation3], 0
    // Predicated region
    $region2: #{tpu_custom_call.1} parent=1 // pred_check
      _
    $region3: #{tpu_custom_call.1} parent=1 // pred_check_branch
      %8 = sbr.rel (0) target = $region5
    $region4: #{tpu_custom_call.1} parent=1 // pred_region
      %10 = vsyncadd [#allocation3], 0
      %s11 = sshll.u32 %s0, 4
      %s12 = int_to_ptr.hbm [resolvable:$true] %s11
      %s13 = sshll.u32 [#allocation2], 4
      %s14 = int_to_ptr.vmem [resolvable:$true] %s13
      %19 = dma.hbm_to_vmem [thread:$0]  %s12, 256, %s14, [#allocation3], 128, 128, 8
    $region5: #{tpu_custom_call.1} parent=1 // pred_fallthru
      _
    // Predicated region
    $region6: #{tpu_custom_call.1} parent=1 // pred_check
      _
    $region7: #{tpu_custom_call.1} parent=1 // pred_check_branch
      %21 = sbr.rel (0) target = $region9
    $region8: #{tpu_custom_call.1} parent=1 // pred_region
      %23 = dma.done [#allocation3], 256
    $region9: #{tpu_custom_call.1} parent=1 // pred_fallthru
      _
    %v24 = vld [vmem:[#allocation2] sm:$0xff]
    %v25 = vld [vmem:[#allocation2 + $0x8] sm:$0xff]
    %26 = vxpose.xlu0.b32.start [1/16] %v24, 128
    %27 = vxpose.xlu0.b32.cont [2/16] 0.0, 128
    %28 = vxpose.xlu0.b32.cont [3/16] 0.0, 128
    %29 = vxpose.xlu0.b32.cont [4/16] 0.0, 128
    %30 = vxpose.xlu0.b32.cont [5/16] 0.0, 128
    %31 = vxpose.xlu0.b32.cont [6/16] 0.0, 128
    %32 = vxpose.xlu0.b32.cont [7/16] 0.0, 128
    %33 = vxpose.xlu0.b32.cont [8/16] 0.0, 128
    %34 = vxpose.xlu0.b32.cont [9/16] 0.0, 128
    %35 = vxpose.xlu0.b32.cont [10/16] 0.0, 128
    %36 = vxpose.xlu0.b32.cont [11/16] 0.0, 128
    %37 = vxpose.xlu0.b32.cont [12/16] 0.0, 128
    %38 = vxpose.xlu0.b32.cont [13/16] 0.0, 128
    %39 = vxpose.xlu0.b32.cont [14/16] 0.0, 128
    %40 = vxpose.xlu0.b32.cont [15/16] 0.0, 128
    %41 = vxpose.xlu0.b32.end [16/16] 0.0, 128
    %v42 = vpop.trf.xlu0
    %v43 = vpop.trf.xlu0
    %v44 = vpop.trf.xlu0
    %v45 = vpop.trf.xlu0
    %v46 = vpop.trf.xlu0
    %v47 = vpop.trf.xlu0
    %v48 = vpop.trf.xlu0
    %v49 = vpop.trf.xlu0
    %v50 = vpop.trf.xlu0
    %v51 = vpop.trf.xlu0
    %v52 = vpop.trf.xlu0
    %v53 = vpop.trf.xlu0
    %v54 = vpop.trf.xlu0
    %v55 = vpop.trf.xlu0
    %v56 = vpop.trf.xlu0
    %v57 = vpop.trf.xlu0
    %58 = vxpose.xlu0.b32.start [1/16] %v25, 128
    %59 = vxpose.xlu0.b32.cont [2/16] 0.0, 128
    %60 = vxpose.xlu0.b32.cont [3/16] 0.0, 128
    %61 = vxpose.xlu0.b32.cont [4/16] 0.0, 128
    %62 = vxpose.xlu0.b32.cont [5/16] 0.0, 128
    %63 = vxpose.xlu0.b32.cont [6/16] 0.0, 128
    %64 = vxpose.xlu0.b32.cont [7/16] 0.0, 128
    %65 = vxpose.xlu0.b32.cont [8/16] 0.0, 128
    %66 = vxpose.xlu0.b32.cont [9/16] 0.0, 128
    %67 = vxpose.xlu0.b32.cont [10/16] 0.0, 128
    %68 = vxpose.xlu0.b32.cont [11/16] 0.0, 128
    %69 = vxpose.xlu0.b32.cont [12/16] 0.0, 128
    %70 = vxpose.xlu0.b32.cont [13/16] 0.0, 128
    %71 = vxpose.xlu0.b32.cont [14/16] 0.0, 128
    %72 = vxpose.xlu0.b32.cont [15/16] 0.0, 128
    %73 = vxpose.xlu0.b32.end [16/16] 0.0, 128
    %v74 = vpop.trf.xlu0
    %v75 = vpop.trf.xlu0
    %v76 = vpop.trf.xlu0
    %v77 = vpop.trf.xlu0
    %v78 = vpop.trf.xlu0
    %v79 = vpop.trf.xlu0
    %v80 = vpop.trf.xlu0
    %v81 = vpop.trf.xlu0
    %v82 = vpop.trf.xlu0
    %v83 = vpop.trf.xlu0
    %v84 = vpop.trf.xlu0
    %v85 = vpop.trf.xlu0
    %v86 = vpop.trf.xlu0
    %v87 = vpop.trf.xlu0
    %v88 = vpop.trf.xlu0
    %v89 = vpop.trf.xlu0
    %vm90 = vcmask 64512
    %91 = vst.msk [vmem:[%s1] sm:$0xff] %vm90, %v42
    %92 = vst.msk [vmem:[%s1 + $0x8] sm:$0xff] %vm90, %v43
    %93 = vst.msk [vmem:[%s1 + $0x10] sm:$0xff] %vm90, %v44
    %94 = vst.msk [vmem:[%s1 + $0x18] sm:$0xff] %vm90, %v45
    %95 = vst.msk [vmem:[%s1 + $0x20] sm:$0xff] %vm90, %v46
    %96 = vst.msk [vmem:[%s1 + $0x28] sm:$0xff] %vm90, %v47
    %97 = vst.msk [vmem:[%s1 + $0x30] sm:$0xff] %vm90, %v48
    %98 = vst.msk [vmem:[%s1 + $0x38] sm:$0xff] %vm90, %v49
    %99 = vst.msk [vmem:[%s1 + $0x40] sm:$0xff] %vm90, %v50
    %100 = vst.msk [vmem:[%s1 + $0x48] sm:$0xff] %vm90, %v51
    %101 = vst.msk [vmem:[%s1 + $0x50] sm:$0xff] %vm90, %v52
    %102 = vst.msk [vmem:[%s1 + $0x58] sm:$0xff] %vm90, %v53
    %103 = vst.msk [vmem:[%s1 + $0x60] sm:$0xff] %vm90, %v54
    %104 = vst.msk [vmem:[%s1 + $0x68] sm:$0xff] %vm90, %v55
    %105 = vst.msk [vmem:[%s1 + $0x70] sm:$0xff] %vm90, %v56
    %106 = vst.msk [vmem:[%s1 + $0x78] sm:$0xff] %vm90, %v57
    %107 = vst.msk [vmem:[%s1 + $0x80] sm:$0xff] %vm90, %v74
    %108 = vst.msk [vmem:[%s1 + $0x88] sm:$0xff] %vm90, %v75
    %109 = vst.msk [vmem:[%s1 + $0x90] sm:$0xff] %vm90, %v76
    %110 = vst.msk [vmem:[%s1 + $0x98] sm:$0xff] %vm90, %v77
    %111 = vst.msk [vmem:[%s1 + $0xa0] sm:$0xff] %vm90, %v78
    %112 = vst.msk [vmem:[%s1 + $0xa8] sm:$0xff] %vm90, %v79
    %113 = vst.msk [vmem:[%s1 + $0xb0] sm:$0xff] %vm90, %v80
    %114 = vst.msk [vmem:[%s1 + $0xb8] sm:$0xff] %vm90, %v81
    %115 = vst.msk [vmem:[%s1 + $0xc0] sm:$0xff] %vm90, %v82
    %116 = vst.msk [vmem:[%s1 + $0xc8] sm:$0xff] %vm90, %v83
    %117 = vst.msk [vmem:[%s1 + $0xd0] sm:$0xff] %vm90, %v84
    %118 = vst.msk [vmem:[%s1 + $0xd8] sm:$0xff] %vm90, %v85
    %119 = vst.msk [vmem:[%s1 + $0xe0] sm:$0xff] %vm90, %v86
    %120 = vst.msk [vmem:[%s1 + $0xe8] sm:$0xff] %vm90, %v87
    %121 = vst.msk [vmem:[%s1 + $0xf0] sm:$0xff] %vm90, %v88
    %122 = vst.msk [vmem:[%s1 + $0xf8] sm:$0xff] %vm90, %v89
    // Predicated region
    $region10: #{tpu_custom_call.1} parent=1 // pred_check
      _
    $region11: #{tpu_custom_call.1} parent=1 // pred_check_branch
      %124 = sbr.rel (0) target = $region13
    $region12: #{tpu_custom_call.1} parent=1 // pred_region
      _
    $region13: #{tpu_custom_call.1} parent=1 // pred_fallthru
      _
    // Predicated region
    $region14: #{tpu_custom_call.1} parent=1 // pred_check
      _
    $region15: #{tpu_custom_call.1} parent=1 // pred_check_branch
      %126 = sbr.rel (0) target = $region17
    $region16: #{tpu_custom_call.1} parent=1 // pred_region
      _
    $region17: #{tpu_custom_call.1} parent=1 // pred_fallthru
      _
    %127 = vsyncpa [#allocation3], 1

</llo_original>
